<compile_context>
chip_gen: v7x
topology: tpu7x:2x2x1
jax: 0.10.0
libtpu: 0.0.40
codegen_flags: <defaults>
</compile_context>

<pallas_src>
import functools

import jax
import jax.numpy as jnp
from jax import lax
from jax.experimental import pallas as pl
from jax.experimental.pallas import tpu as pltpu


def _ce2d_kernel(pred_ref, tgt_ref, loss_ref, cnt_ref, loss_acc, cnt_acc, *,
                 gamma, ignore_label):
    """Per-tile body.

    pred_ref: (1, C, TP) logits (native dtype), classes on sublanes, pixels on lanes
    tgt_ref : (1, 1, TP) int32 labels per pixel
    loss_ref: (1, 1)  f32 output -- total loss (written once, at the end)
    cnt_ref : (1, 1)  f32 output -- valid-pixel count (written once, at the end)
    loss_acc: (1, TP) f32 scratch -- per-lane running loss
    cnt_acc : (1, TP) f32 scratch -- per-lane running count
    """
    n = pl.program_id(0)
    i = pl.program_id(1)
    is_first = jnp.logical_and(n == 0, i == 0)
    is_last = jnp.logical_and(n == pl.num_programs(0) - 1,
                              i == pl.num_programs(1) - 1)

    @pl.when(is_first)
    def _():
        loss_acc[...] = jnp.zeros_like(loss_acc)
        cnt_acc[...] = jnp.zeros_like(cnt_acc)

    x = pred_ref[0].astype(jnp.float32)            # (C, TP)
    t = tgt_ref[0]                                 # (1, TP) int32

    # nn.Softmax2d == softmax over the channel axis.  Only the target-class
    # probability is ever used, so compute p_t directly: C exps + a masked
    # gather + one (1,TP) divide, instead of normalizing the full (C,TP) tile.
    m = jnp.max(x, axis=0, keepdims=True)          # (1, TP)
    e = jnp.exp(x - m)                             # (C, TP) -- the only O(C) EUP work
    s = jnp.sum(e, axis=0, keepdims=True)          # (1, TP)

    cls = lax.broadcasted_iota(jnp.int32, x.shape, 0)          # (C, TP)
    e_t = jnp.sum(jnp.where(cls == t, e, 0.0), axis=0, keepdims=True)  # (1, TP)
    p_t = e_t / s
    # clamp(P, 1e-9, 1-1e-9) then gather == gather then clamp (elementwise).
    p_t = jnp.clip(p_t, 1e-9, 1.0 - 1e-9)

    # target_mask = (target >= 0) & (target != ignore_label)
    valid = jnp.logical_and(t >= 0, t != ignore_label)
    validf = valid.astype(jnp.float32)             # (1, TP)

    # batch_loss = -(1 - p_t)^gamma * log(p_t); integer gamma (default 2)
    # specialized to a VALU multiply chain instead of pow (= exp(g*log(x))).
    one_m = 1.0 - p_t
    g = float(gamma)
    if g == int(g) and int(g) >= 0:
        k = int(g)
        focal = jnp.ones_like(one_m)
        base = one_m
        while k > 0:
            if k & 1:
                focal = focal * base
            k >>= 1
            if k:
                base = base * base
    else:
        focal = jnp.power(one_m, g)

    per_pix = -(focal * jnp.log(p_t)) * validf     # (1, TP)

    # Per-lane accumulation: one VPU add per tile.  The cross-lane (XLU)
    # reduction and the (1,1) scalar writeback happen exactly once.
    loss_acc[...] += per_pix
    cnt_acc[...] += validf

    @pl.when(is_last)
    def _():
        loss_ref[...] = jnp.sum(loss_acc[...]).reshape(1, 1)
        cnt_ref[...] = jnp.sum(cnt_acc[...]).reshape(1, 1)


def cross_entropy_2d(predict, target, *, class_num, alpha=None, gamma=2,
                     size_average=True, ignore_label=255, tile_pixels=8192):
    """JAX/Pallas equivalent of CrossEntropy2d.forward.

    predict: (N, C, H, W) float logits (NCHW, any float dtype)
    target : (N, H, W)    int labels
    """
    # alpha is created in the torch __init__ but never used in forward();
    # materialize it for fidelity.
    if alpha is None:
        alpha = jnp.ones((class_num, 1), jnp.float32)
    del alpha  # unused in forward

    N, C, H, W = predict.shape
    HW = H * W

    # Free reshapes: keep NCHW layout and native dtype (cast happens in-kernel).
    pred = predict.reshape(N, C, HW)
    tgt = target.reshape(N, 1, HW).astype(jnp.int32)

    # Lane-tile size: largest requested tile that fits the (128-aligned) pixel
    # count.  Padded pixels get the ignore label -> contribute nothing.
    hw128 = ((HW + 127) // 128) * 128
    tp = min(int(tile_pixels), hw128)
    tp = max(128, (tp // 128) * 128)
    pad = (-HW) % tp
    if pad:
        pred = jnp.pad(pred, ((0, 0), (0, 0), (0, pad)))
        tgt = jnp.pad(tgt, ((0, 0), (0, 0), (0, pad)),
                      constant_values=ignore_label)
    HWp = HW + pad
    n_tiles = HWp // tp

    kernel = functools.partial(_ce2d_kernel, gamma=float(gamma),
                               ignore_label=int(ignore_label))

    loss_sum, cnt = pl.pallas_call(
        kernel,
        out_shape=(jax.ShapeDtypeStruct((1, 1), jnp.float32),
                   jax.ShapeDtypeStruct((1, 1), jnp.float32)),
        grid_spec=pltpu.PrefetchScalarGridSpec(
            num_scalar_prefetch=0,
            grid=(N, n_tiles),
            in_specs=[
                pl.BlockSpec((1, C, tp), lambda n, i: (n, 0, i)),
                pl.BlockSpec((1, 1, tp), lambda n, i: (n, 0, i)),
            ],
            out_specs=(
                pl.BlockSpec((1, 1), lambda n, i: (0, 0)),
                pl.BlockSpec((1, 1), lambda n, i: (0, 0)),
            ),
            scratch_shapes=[
                pltpu.VMEM((1, tp), jnp.float32),
                pltpu.VMEM((1, tp), jnp.float32),
            ],
        ),
        compiler_params=pltpu.CompilerParams(
            # A single running accumulator carries across both axes.
            dimension_semantics=("arbitrary", "arbitrary")),
    )(pred, tgt)

    loss_sum = loss_sum[0, 0]
    cnt = cnt[0, 0]
    if size_average:
        # NaN if every pixel is ignored (matches torch's mean of empty tensor).
        return loss_sum / cnt
    return loss_sum


def _reference(predict, target, *, gamma=2, size_average=True, ignore_label=255):
    """Plain-JAX reference of the intended semantics (for a sanity check)."""
    N, C, H, W = predict.shape
    p = jax.nn.softmax(predict.astype(jnp.float32), axis=1)
    p = jnp.clip(p, 1e-9, 1.0 - 1e-9)
    tgt = target.astype(jnp.int32)
    valid = jnp.logical_and(tgt >= 0, tgt != ignore_label)
    safe_t = jnp.where(valid, tgt, 0)
    p_t = jnp.take_along_axis(p, safe_t[:, None, :, :], axis=1)[:, 0]
    loss = -jnp.power(1.0 - p_t, float(gamma)) * jnp.log(p_t)
    loss = jnp.where(valid, loss, 0.0)
    if size_average:
        return jnp.sum(loss) / jnp.sum(valid.astype(jnp.float32))
    return jnp.sum(loss)


if __name__ == "__main__":
    key = jax.random.PRNGKey(0)
    k_pred, k_tgt, k_ign = jax.random.split(key, 3)

    N, C, H, W = 2, 4, 16, 16
    class_num = C
    ignore_label = 255

    predict = jax.random.normal(k_pred, (N, C, H, W), dtype=jnp.float32)
    target = jax.random.randint(k_tgt, (N, H, W), 0, class_num, dtype=jnp.int32)
    # Sprinkle in some ignored pixels.
    ign_mask = jax.random.uniform(k_ign, (N, H, W)) < 0.1
    target = jnp.where(ign_mask, ignore_label, target)

    loss = cross_entropy_2d(predict, target, class_num=class_num, gamma=2,
                            size_average=True, ignore_label=ignore_label)
    loss = jax.block_until_ready(loss)

    ref = _reference(predict, target, gamma=2, size_average=True,
                     ignore_label=ignore_label)
    assert jnp.allclose(loss, ref, rtol=1e-5, atol=1e-5), (loss, ref)

    print("KERNEL_OK")
</pallas_src>

<mosaic_0001>
module attributes {stable_mosaic.version = 11 : i64} {
  func.func @_ce2d_kernel(%arg0: i32, %arg1: i32, %arg2: memref<1x4x256xf32, #tpu.memory_space<vmem>>, %arg3: memref<1x1x256xi32, #tpu.memory_space<vmem>>, %arg4: memref<1x1xf32, #tpu.memory_space<vmem>>, %arg5: memref<1x1xf32, #tpu.memory_space<vmem>>, %arg6: memref<1x256xf32, #tpu.memory_space<vmem>>, %arg7: memref<1x256xf32, #tpu.memory_space<vmem>>) attributes {dimension_semantics = [#tpu.dimension_semantics<arbitrary>, #tpu.dimension_semantics<arbitrary>], iteration_bounds = array<i64: 2, 1>, scalar_prefetch = 0 : i64, scratch_operands = 2 : i64, tpu.core_type = #tpu.core_type<tc>, window_params = [{transform_indices = @transform_0, window_bounds = array<i64: 1, 4, 256>}, {transform_indices = @transform_1, window_bounds = array<i64: 1, 1, 256>}, {pipeline_mode = #tpu.pipeline_mode<synchronous>, transform_indices = @transform_2, window_bounds = array<i64: 1, 1>}, {pipeline_mode = #tpu.pipeline_mode<synchronous>, transform_indices = @transform_3, window_bounds = array<i64: 1, 1>}]} {
    %c0_i32 = arith.constant 0 : i32
    %0 = arith.cmpi eq, %arg0, %c0_i32 : i32
    %c0_i32_0 = arith.constant 0 : i32
    %1 = arith.cmpi eq, %arg1, %c0_i32_0 : i32
    %2 = arith.andi %0, %1 : i1
    %c1_i32 = arith.constant 1 : i32
    %3 = arith.cmpi eq, %arg0, %c1_i32 : i32
    %c0_i32_1 = arith.constant 0 : i32
    %4 = arith.cmpi eq, %arg1, %c0_i32_1 : i32
    %5 = arith.andi %3, %4 : i1
    %6 = arith.extui %2 : i1 to i32
    %c0_i32_2 = arith.constant 0 : i32
    %7 = arith.cmpi ne, %6, %c0_i32_2 : i32
    scf.if %7 {
      %cst_26 = arith.constant 0.000000e+00 : f32
      %56 = vector.broadcast %cst_26 : f32 to vector<1x256xf32>
      %c0_27 = arith.constant 0 : index
      %c0_28 = arith.constant 0 : index
      %57 = vector.load %arg6[%c0_27, %c0_28] : memref<1x256xf32, #tpu.memory_space<vmem>>, vector<1x256xf32>
      tpu.vector_store %arg6[%c0_27, %c0_28], %56 {strides = array<i32>} : memref<1x256xf32, #tpu.memory_space<vmem>>, vector<1x256xf32>,
      %cst_29 = arith.constant 0.000000e+00 : f32
      %58 = vector.broadcast %cst_29 : f32 to vector<1x256xf32>
      %c0_30 = arith.constant 0 : index
      %c0_31 = arith.constant 0 : index
      %59 = vector.load %arg7[%c0_30, %c0_31] : memref<1x256xf32, #tpu.memory_space<vmem>>, vector<1x256xf32>
      tpu.vector_store %arg7[%c0_30, %c0_31], %58 {strides = array<i32>} : memref<1x256xf32, #tpu.memory_space<vmem>>, vector<1x256xf32>,
    } else {
    }
    %c0 = arith.constant 0 : index
    %c0_3 = arith.constant 0 : index
    %c0_4 = arith.constant 0 : index
    %8 = vector.load %arg2[%c0, %c0_3, %c0_4] : memref<1x4x256xf32, #tpu.memory_space<vmem>>, vector<1x4x256xf32>
    %9 = vector.shape_cast %8 : vector<1x4x256xf32> to vector<4x256xf32>
    %c0_5 = arith.constant 0 : index
    %c0_6 = arith.constant 0 : index
    %c0_7 = arith.constant 0 : index
    %10 = vector.load %arg3[%c0_5, %c0_6, %c0_7] : memref<1x1x256xi32, #tpu.memory_space<vmem>>, vector<1x1x256xi32>
    %11 = vector.shape_cast %10 : vector<1x1x256xi32> to vector<1x256xi32>
    %cst = arith.constant dense<0xFF800000> : vector<256xf32>
    %12 = vector.multi_reduction <maximumf>, %9, %cst [0] : vector<4x256xf32> to vector<256xf32>
    %13 = vector.shape_cast %12 : vector<256xf32> to vector<1x256xf32>
    %14 = vector.broadcast %13 : vector<1x256xf32> to vector<4x256xf32>
    %15 = arith.subf %9, %14 : vector<4x256xf32>
    %16 = math.exp %15 : vector<4x256xf32>
    %cst_8 = arith.constant dense<0.000000e+00> : vector<256xf32>
    %17 = vector.multi_reduction <add>, %16, %cst_8 [0] : vector<4x256xf32> to vector<256xf32>
    %18 = vector.shape_cast %17 : vector<256xf32> to vector<1x256xf32>
    %19 = tpu.iota {dimensions = array<i32: 0>} : vector<4x256xi32>
    %20 = vector.broadcast %11 : vector<1x256xi32> to vector<4x256xi32>
    %21 = arith.cmpi eq, %19, %20 : vector<4x256xi32>
    %cst_9 = arith.constant 0.000000e+00 : f32
    %22 = vector.broadcast %cst_9 : f32 to vector<4x256xf32>
    %23 = arith.select %21, %16, %22 : vector<4x256xi1>, vector<4x256xf32>
    %cst_10 = arith.constant dense<0.000000e+00> : vector<256xf32>
    %24 = vector.multi_reduction <add>, %23, %cst_10 [0] : vector<4x256xf32> to vector<256xf32>
    %25 = vector.shape_cast %24 : vector<256xf32> to vector<1x256xf32>
    %26 = arith.divf %25, %18 : vector<1x256xf32>
    %cst_11 = arith.constant 9.99999971E-10 : f32
    %cst_12 = arith.constant 1.000000e+00 : f32
    %27 = vector.broadcast %cst_11 : f32 to vector<1x256xf32>
    %28 = arith.maximumf %27, %26 : vector<1x256xf32>
    %29 = vector.broadcast %cst_12 : f32 to vector<1x256xf32>
    %30 = arith.minimumf %29, %28 : vector<1x256xf32>
    %c0_i32_13 = arith.constant 0 : i32
    %31 = vector.broadcast %c0_i32_13 : i32 to vector<1x256xi32>
    %32 = arith.cmpi sge, %11, %31 : vector<1x256xi32>
    %c255_i32 = arith.constant 255 : i32
    %33 = vector.broadcast %c255_i32 : i32 to vector<1x256xi32>
    %34 = arith.cmpi ne, %11, %33 : vector<1x256xi32>
    %35 = arith.andi %32, %34 : vector<1x256xi1>
    %36 = arith.extui %35 : vector<1x256xi1> to vector<1x256xi32>
    %37 = arith.sitofp %36 : vector<1x256xi32> to vector<1x256xf32>
    %cst_14 = arith.constant 1.000000e+00 : f32
    %38 = vector.broadcast %cst_14 : f32 to vector<1x256xf32>
    %39 = arith.subf %38, %30 : vector<1x256xf32>
    %cst_15 = arith.constant 1.000000e+00 : f32
    %40 = vector.broadcast %cst_15 : f32 to vector<1x256xf32>
    %41 = arith.mulf %39, %39 : vector<1x256xf32>
    %42 = arith.mulf %40, %41 : vector<1x256xf32>
    %43 = math.log %30 : vector<1x256xf32>
    %44 = arith.mulf %42, %43 : vector<1x256xf32>
    %cst_16 = arith.constant 0.000000e+00 : f32
    %45 = vector.broadcast %cst_16 : f32 to vector<1x256xf32>
    %46 = arith.subf %45, %44 : vector<1x256xf32>
    %47 = arith.mulf %46, %37 : vector<1x256xf32>
    %c0_17 = arith.constant 0 : index
    %c0_18 = arith.constant 0 : index
    %48 = vector.load %arg6[%c0_17, %c0_18] : memref<1x256xf32, #tpu.memory_space<vmem>>, vector<1x256xf32>
    %49 = arith.addf %48, %47 : vector<1x256xf32>
    %c0_19 = arith.constant 0 : index
    %c0_20 = arith.constant 0 : index
    %50 = vector.load %arg6[%c0_19, %c0_20] : memref<1x256xf32, #tpu.memory_space<vmem>>, vector<1x256xf32>
    tpu.vector_store %arg6[%c0_19, %c0_20], %49 {strides = array<i32>} : memref<1x256xf32, #tpu.memory_space<vmem>>, vector<1x256xf32>,
    %c0_21 = arith.constant 0 : index
    %c0_22 = arith.constant 0 : index
    %51 = vector.load %arg7[%c0_21, %c0_22] : memref<1x256xf32, #tpu.memory_space<vmem>>, vector<1x256xf32>
    %52 = arith.addf %51, %37 : vector<1x256xf32>
    %c0_23 = arith.constant 0 : index
    %c0_24 = arith.constant 0 : index
    %53 = vector.load %arg7[%c0_23, %c0_24] : memref<1x256xf32, #tpu.memory_space<vmem>>, vector<1x256xf32>
    tpu.vector_store %arg7[%c0_23, %c0_24], %52 {strides = array<i32>} : memref<1x256xf32, #tpu.memory_space<vmem>>, vector<1x256xf32>,
    %54 = arith.extui %5 : i1 to i32
    %c0_i32_25 = arith.constant 0 : i32
    %55 = arith.cmpi ne, %54, %c0_i32_25 : i32
    scf.if %55 {
      %c0_26 = arith.constant 0 : index
      %c0_27 = arith.constant 0 : index
      %56 = vector.load %arg6[%c0_26, %c0_27] : memref<1x256xf32, #tpu.memory_space<vmem>>, vector<1x256xf32>
      %57 = vector.shape_cast %56 : vector<1x256xf32> to vector<1x1x256xf32>
      %cst_28 = arith.constant dense<0.000000e+00> : vector<1xf32>
      %58 = vector.multi_reduction <add>, %57, %cst_28 [1, 2] : vector<1x1x256xf32> to vector<1xf32>
      %59 = vector.shape_cast %58 : vector<1xf32> to vector<1x1x1xf32>
      %60 = vector.extract %59[0, 0, 0] : f32 from vector<1x1x1xf32>
      %61 = vector.broadcast %60 : f32 to vector<1x1xf32>
      %c0_29 = arith.constant 0 : index
      %c0_30 = arith.constant 0 : index
      %62 = vector.load %arg4[%c0_29, %c0_30] : memref<1x1xf32, #tpu.memory_space<vmem>>, vector<1x1xf32>
      tpu.vector_store %arg4[%c0_29, %c0_30], %61 {strides = array<i32>} : memref<1x1xf32, #tpu.memory_space<vmem>>, vector<1x1xf32>,
      %c0_31 = arith.constant 0 : index
      %c0_32 = arith.constant 0 : index
      %63 = vector.load %arg7[%c0_31, %c0_32] : memref<1x256xf32, #tpu.memory_space<vmem>>, vector<1x256xf32>
      %64 = vector.shape_cast %63 : vector<1x256xf32> to vector<1x1x256xf32>
      %cst_33 = arith.constant dense<0.000000e+00> : vector<1xf32>
      %65 = vector.multi_reduction <add>, %64, %cst_33 [1, 2] : vector<1x1x256xf32> to vector<1xf32>
      %66 = vector.shape_cast %65 : vector<1xf32> to vector<1x1x1xf32>
      %67 = vector.extract %66[0, 0, 0] : f32 from vector<1x1x1xf32>
      %68 = vector.broadcast %67 : f32 to vector<1x1xf32>
      %c0_34 = arith.constant 0 : index
      %c0_35 = arith.constant 0 : index
      %69 = vector.load %arg5[%c0_34, %c0_35] : memref<1x1xf32, #tpu.memory_space<vmem>>, vector<1x1xf32>
      tpu.vector_store %arg5[%c0_34, %c0_35], %68 {strides = array<i32>} : memref<1x1xf32, #tpu.memory_space<vmem>>, vector<1x1xf32>,
    } else {
    }
    return
  }
  func.func @transform_0(%arg0: i32, %arg1: i32) -> (i32, i32, i32) {
    %c0_i32 = arith.constant 0 : i32
    %c0_i32_0 = arith.constant 0 : i32
    return %arg0, %c0_i32, %arg1 : i32, i32, i32
  }
  func.func @transform_1(%arg0: i32, %arg1: i32) -> (i32, i32, i32) {
    %c0_i32 = arith.constant 0 : i32
    %c0_i32_0 = arith.constant 0 : i32
    return %arg0, %c0_i32, %arg1 : i32, i32, i32
  }
  func.func @transform_2(%arg0: i32, %arg1: i32) -> (i32, i32) {
    %c0_i32 = arith.constant 0 : i32
    %c0_i32_0 = arith.constant 0 : i32
    %c0_i32_1 = arith.constant 0 : i32
    return %c0_i32, %c0_i32_0 : i32, i32
  }
  func.func @transform_3(%arg0: i32, %arg1: i32) -> (i32, i32) {
    %c0_i32 = arith.constant 0 : i32
    %c0_i32_0 = arith.constant 0 : i32
    %c0_i32_1 = arith.constant 0 : i32
    return %c0_i32, %c0_i32_0 : i32, i32
  }
}

</mosaic_0001>

<llo_original>
// kernel: tpu_custom_call.1
$region0: #{tpu_custom_call.1}
  #allocation0 [shape = 'u32[]', space=smem, size = 0x4, offset = 0x4, fixed_abs, tag = 'smem constant byte address 0x4 - core index']
  #allocation1 [shape = 'u32[144,128]{1,0:T(1,128)}', space=vmem, size = 0x12000, scoped, tag = 'internal scratch']
  #allocation2 [shape = 'f32[1,256]{1,0:T(1,128)}', space=vmem, size = 0x400, scoped, tag = 'scratch operand']
  #allocation3 [shape = 'f32[1,256]{1,0:T(1,128)}', space=vmem, size = 0x400, scoped, tag = 'scratch operand']
  %s0 = inlined_call_operand.hbm [shape: f32[2,4,256], index: 0, kind: input, shape index: {}]
  %s1 = inlined_call_operand.hbm [shape: s32[2,1,256], index: 1, kind: input, shape index: {}]
  %s2 = inlined_call_operand.hbm [shape: f32[1,1], index: 2, kind: output, shape index: {0}]
  %s3 = inlined_call_operand.hbm [shape: f32[1,1], index: 3, kind: output, shape index: {1}]
  %4 = xla_tuple %s2, %s3
  %s5 = sld [smem:[#allocation0]]
  $region65: #{tpu_custom_call.1} parent=0
    _
  %s7 = ssub.s32 1, %s5
  %s8 = scalar_select 0, %s7, %s5
  $region1: #{tpu_custom_call.1} parent=0
    #allocation4 [shape = 'u8[8192]{0}', space=vmem, size = 0x2000, scoped, tag = 'input window, operand 0']
    #allocation5 [shape = 's32[2]{0}', space=sflag, size = 0x8, scoped, tag = 'scoped memory for tpu_custom_call.1']
    #allocation6 [shape = 's32[2]{0}', space=sflag, size = 0x8, scoped, tag = 'scoped memory for tpu_custom_call.1']
    #allocation7 [shape = 'u8[2048]{0}', space=vmem, size = 0x800, scoped, tag = 'input window, operand 1']
    #allocation8 [shape = 's32[2]{0}', space=sflag, size = 0x8, scoped, tag = 'scoped memory for tpu_custom_call.1']
    #allocation9 [shape = 'u8[512]{0}', space=vmem, size = 0x400, scoped, tag = 'output window, operand 0, single buffered']
    #allocation10 [shape = 'u8[512]{0}', space=vmem, size = 0x400, scoped, tag = 'output window, operand 1, single buffered']
    #allocation11 [shape = 's32[1]{0}', space=sflag, size = 0x4, scoped, tag = 'scoped memory for tpu_custom_call.1']
    %9 = vsyncpa [#allocation5], 0
    %s10 = scalar_lea.sflag [#allocation5], 1
    %11 = vsyncpa %s10, 0
    %12 = vsyncpa [#allocation8], 0
    %s13 = scalar_lea.sflag [#allocation8], 1
    %14 = vsyncpa %s13, 0
    %15 = vsyncpa [#allocation6], 0
    %16 = vsyncpa [#allocation11], 0
    loop: start=0, step=1, limit=4
    $region2: #{tpu_custom_call.1} parent=1 // loop_pre_header
      _
    $region3: #{tpu_custom_call.1} parent=1 // loop_header
      %s18 = sphi 0, %s22
      %p19 = scmp.ge.s32.totalorder %s18, 4
      %s25 = sphi 0, %s37
      %s26 = sphi 0, %s33
      %s27 = sphi 0, %s25
      %s28 = sphi 0, %s26
      %s29 = sphi 0, %s27
      %s30 = sphi 0, %s28
      %s42 = sphi 0, %s44
      %s45 = sphi 0, %s42
      %s46 = sphi 0, %s45
      %s62 = sphi 0, %s46
      %s70 = sphi 0, %s72
      %s73 = sphi 0, %s70
      %s74 = sphi 0, %s73
      %s90 = sphi 0, %s74
      %s94 = sphi 0, %s94
      %s96 = sphi 0, %s94
      %s97 = sphi 0, %s96
      %s111 = sphi 0, %s97
      %s115 = sphi 0, %s115
      %s117 = sphi 0, %s115
      %s118 = sphi 0, %s117
      %s132 = sphi 0, %s118
    $region4: #{tpu_custom_call.1} parent=1 // loop_header_branch
      %21 = sbr.rel (%p19) target = $region8
    $region5: #{tpu_custom_call.1} parent=1 // loop_body
      %s23 = ssub.s32 %s18, 1
      %s24 = ssub.s32 %s18, 2
      %s31 = sadd.s32 1, %s26
      %p32 = scmp.ge.s32.totalorder %s31, 1
      %s33 = scalar_select %p32, 0, %s31
      %s34 = sadd.s32 1, %s25
      %s35 = scalar_select %p32, %s34, %s25
      %p36 = scmp.ge.s32.totalorder %s35, 2
      %s37 = scalar_select %p36, 0, %s35
      %s38 = ssub.s32 %s25, %s37
      %s39 = ssub.s32 %s26, %s33
      %s40 = sor.u32 %s38, %s39
      %p41 = scmp.eq.s32.totalorder %s40, 0
      %s43 = sadd.s32 %s42, 1
      %s44 = scalar_select %p41, %s42, %s43
      %p47 = pneg %p41
      %p48 = scmp.eq.s32.totalorder %s18, 1
      %p49 = por %p47, %p48
      %p50 = scmp.ne.s32.totalorder %s42, %s45
      %p51 = scmp.eq.s32.totalorder %s18, 0
      %p52 = por %p50, %p51
      %p53 = scmp.ne.s32.totalorder %s42, %s45
      %p54 = scmp.eq.s32.totalorder %s23, 1
      %p55 = por %p53, %p54
      %p56 = scmp.ne.s32.totalorder %s45, %s46
      %p57 = scmp.eq.s32.totalorder %s23, 0
      %p58 = por %p56, %p57
      %p59 = scmp.ne.s32.totalorder %s45, %s46
      %p60 = scmp.eq.s32.totalorder %s24, 1
      %p61 = por %p59, %p60
      %p63 = scmp.ne.s32.totalorder %s46, %s62
      %p64 = scmp.eq.s32.totalorder %s24, 0
      %p65 = por %p63, %p64
      %s66 = ssub.s32 %s25, %s37
      %s67 = ssub.s32 %s26, %s33
      %s68 = sor.u32 %s66, %s67
      %p69 = scmp.eq.s32.totalorder %s68, 0
      %s71 = sadd.s32 %s70, 1
      %s72 = scalar_select %p69, %s70, %s71
      %p75 = pneg %p69
      %p76 = scmp.eq.s32.totalorder %s18, 1
      %p77 = por %p75, %p76
      %p78 = scmp.ne.s32.totalorder %s70, %s73
      %p79 = scmp.eq.s32.totalorder %s18, 0
      %p80 = por %p78, %p79
      %p81 = scmp.ne.s32.totalorder %s70, %s73
      %p82 = scmp.eq.s32.totalorder %s23, 1
      %p83 = por %p81, %p82
      %p84 = scmp.ne.s32.totalorder %s73, %s74
      %p85 = scmp.eq.s32.totalorder %s23, 0
      %p86 = por %p84, %p85
      %p87 = scmp.ne.s32.totalorder %s73, %s74
      %p88 = scmp.eq.s32.totalorder %s24, 1
      %p89 = por %p87, %p88
      %p91 = scmp.ne.s32.totalorder %s74, %s90
      %p92 = scmp.eq.s32.totalorder %s24, 0
      %p93 = por %p91, %p92
      %s95 = sadd.s32 %s94, 1
      %p98 = scmp.eq.s32.totalorder %s18, 1
      %p99 = scmp.ne.s32.totalorder %s94, %s96
      %p100 = scmp.eq.s32.totalorder %s18, 0
      %p101 = por %p99, %p100
      %p102 = scmp.ne.s32.totalorder %s94, %s96
      %p103 = scmp.eq.s32.totalorder %s23, 1
      %p104 = por %p102, %p103
      %p105 = scmp.ne.s32.totalorder %s96, %s97
      %p106 = scmp.eq.s32.totalorder %s23, 0
      %p107 = por %p105, %p106
      %p108 = scmp.ne.s32.totalorder %s96, %s97
      %p109 = scmp.eq.s32.totalorder %s24, 1
      %p110 = por %p108, %p109
      %p112 = scmp.ne.s32.totalorder %s97, %s111
      %p113 = scmp.eq.s32.totalorder %s24, 0
      %p114 = por %p112, %p113
      %s116 = sadd.s32 %s115, 1
      %p119 = scmp.eq.s32.totalorder %s18, 1
      %p120 = scmp.ne.s32.totalorder %s115, %s117
      %p121 = scmp.eq.s32.totalorder %s18, 0
      %p122 = por %p120, %p121
      %p123 = scmp.ne.s32.totalorder %s115, %s117
      %p124 = scmp.eq.s32.totalorder %s23, 1
      %p125 = por %p123, %p124
      %p126 = scmp.ne.s32.totalorder %s117, %s118
      %p127 = scmp.eq.s32.totalorder %s23, 0
      %p128 = por %p126, %p127
      %p129 = scmp.ne.s32.totalorder %s117, %s118
      %p130 = scmp.eq.s32.totalorder %s24, 1
      %p131 = por %p129, %p130
      %p133 = scmp.ne.s32.totalorder %s118, %s132
      %p134 = scmp.eq.s32.totalorder %s24, 0
      %p135 = por %p133, %p134
      %p136 = scmp.le.s32.totalorder 1, %s18
      %p137 = scmp.lt.s32.totalorder %s18, 3
      %p138 = pnand %p136, %p137
      %p139 = pneg %p138
      // Predicated region
      $region9: #{tpu_custom_call.1} parent=5 // pred_check
        _
      $region10: #{tpu_custom_call.1} parent=5 // pred_check_branch
        %141 = sbr.rel (%p138) target = $region12
      $region11: #{tpu_custom_call.1} parent=5 // pred_region
        %s142 = ssub.s32 %s18, 1
      $region12: #{tpu_custom_call.1} parent=5 // pred_fallthru
        _
      %p143 = scmp.lt.s32.totalorder %s18, 2
      // Predicated region
      $region13: #{tpu_custom_call.1} parent=5 // pred_check
        %p144 = pneg %p143
      $region14: #{tpu_custom_call.1} parent=5 // pred_check_branch
        %146 = sbr.rel (%p144) target = $region16
      $region15: #{tpu_custom_call.1} parent=5 // pred_region
        // Predicated region
        $region17: #{tpu_custom_call.1} parent=15 // pred_check
          %p147 = pneg %p52
        $region18: #{tpu_custom_call.1} parent=15 // pred_check_branch
          %149 = sbr.rel (%p147) target = $region20
        $region19: #{tpu_custom_call.1} parent=15 // pred_region
          %s150 = sand.u32 %s42, 1
          %s151 = scalar_lea.sflag [#allocation5], %s150
          %s152 = sand.u32 %s42, 1
          %s153 = smul.addr %s152, 8
          %s154 = scalar_lea.vmem [#allocation4], %s153
          %s155 = smul.u32 2, %s26
          %s157 = ssub.s32 128, 128
          %158 = vsyncadd %s151, %s157
          %s159 = smul.addr %s25, 2
          %s160 = sadd.s32 %s155, %s159
          %s161 = smul.addr %s160, 64
          %s162 = scalar_lea.hbm %s0, %s161
          %s164 = sshll.u32 %s154, 4
          %s165 = int_to_ptr.vmem [resolvable:$true] %s164
          %167 = dma.hbm_to_vmem [thread:$0]  %s162, 128, %s165, %s151
        $region20: #{tpu_custom_call.1} parent=15 // pred_fallthru
          _
        // Predicated region
        $region21: #{tpu_custom_call.1} parent=15 // pred_check
          %p168 = pneg %p80
        $region22: #{tpu_custom_call.1} parent=15 // pred_check_branch
          %170 = sbr.rel (%p168) target = $region24
        $region23: #{tpu_custom_call.1} parent=15 // pred_region
          %s171 = sand.u32 %s70, 1
          %s172 = scalar_lea.sflag [#allocation8], %s171
          %s173 = sand.u32 %s70, 1
          %s174 = smul.addr %s173, 2
          %s175 = scalar_lea.vmem [#allocation7], %s174
          %s176 = smul.u32 2, %s26
          %s178 = ssub.s32 32, 32
          %179 = vsyncadd %s172, %s178
          %s180 = smul.addr %s25, 2
          %s181 = sadd.s32 %s176, %s180
          %s182 = smul.addr %s181, 16
          %s183 = scalar_lea.hbm %s1, %s182
          %s185 = sshll.u32 %s175, 4
          %s186 = int_to_ptr.vmem [resolvable:$true] %s185
          %188 = dma.hbm_to_vmem [thread:$0]  %s183, 32, %s186, %s172
        $region24: #{tpu_custom_call.1} parent=15 // pred_fallthru
          _
      $region16: #{tpu_custom_call.1} parent=5 // pred_fallthru
        _
      %p189 = scmp.le.s32.totalorder 1, %s18
      %p190 = scmp.lt.s32.totalorder %s18, 3
      %p191 = pnand %p189, %p190
      %p192 = pneg %p191
      // Predicated region
      $region25: #{tpu_custom_call.1} parent=5 // pred_check
        _
      $region26: #{tpu_custom_call.1} parent=5 // pred_check_branch
        %194 = sbr.rel (%p191) target = $region28
      $region27: #{tpu_custom_call.1} parent=5 // pred_region
        %s195 = ssub.s32 %s18, 1
        %s196 = sand.u32 %s45, 1
        %s197 = scalar_lea.sflag [#allocation5], %s196
        %s198 = sand.u32 %s45, 1
        %s199 = smul.addr %s198, 8
        %s200 = scalar_lea.vmem [#allocation4], %s199
        // Predicated region
        $region29: #{tpu_custom_call.1} parent=27 // pred_check
          %p201 = pneg %p58
        $region30: #{tpu_custom_call.1} parent=27 // pred_check_branch
          %203 = sbr.rel (%p201) target = $region32
        $region31: #{tpu_custom_call.1} parent=27 // pred_region
          %204 = dma.done %s197, 128
        $region32: #{tpu_custom_call.1} parent=27 // pred_fallthru
          _
        %s205 = sand.u32 %s73, 1
        %s206 = scalar_lea.sflag [#allocation8], %s205
        %s207 = sand.u32 %s73, 1
        %s208 = smul.addr %s207, 2
        %s209 = scalar_lea.vmem [#allocation7], %s208
        // Predicated region
        $region33: #{tpu_custom_call.1} parent=27 // pred_check
          %p210 = pneg %p86
        $region34: #{tpu_custom_call.1} parent=27 // pred_check_branch
          %212 = sbr.rel (%p210) target = $region36
        $region35: #{tpu_custom_call.1} parent=27 // pred_region
          %213 = dma.done %s206, 32
        $region36: #{tpu_custom_call.1} parent=27 // pred_fallthru
          _
        %s214 = sand.u32 %s45, 1
        %s215 = scalar_lea.sflag [#allocation5], %s214
        %s216 = sand.u32 %s45, 1
        %s217 = smul.addr %s216, 8
        %s218 = scalar_lea.vmem [#allocation4], %s217
        %p219 = pneg %p58
        %p220 = pneg %p55
        %s221 = sand.u32 %s73, 1
        %s222 = scalar_lea.sflag [#allocation8], %s221
        %s223 = sand.u32 %s73, 1
        %s224 = smul.addr %s223, 2
        %s225 = scalar_lea.vmem [#allocation7], %s224
        %p226 = pneg %p86
        %p227 = pneg %p83
        %p228 = pneg %p107
        %p229 = pneg %p104
        %p230 = pneg %p128
        %p231 = pneg %p125
        %s232 = smul.u32 2, %s28
        %s233 = smul.u32 2, %s28
        %p234 = scmp.eq.s32.totalorder %s27, 0
        %p235 = scmp.eq.s32.totalorder %s28, 0
        %p236 = pnand %p234, %p235
        %p237 = pneg %p236
        %p238 = scmp.eq.s32.totalorder %s27, 1
        %p239 = pnand %p238, %p235
        %p240 = pneg %p239
        // Predicated region
        $region37: #{tpu_custom_call.1} parent=27 // pred_check
          _
        $region38: #{tpu_custom_call.1} parent=27 // pred_check_branch
          %242 = sbr.rel (%p236) target = $region40
        $region39: #{tpu_custom_call.1} parent=27 // pred_region
          %v243 = vlaneseq
          %vm244 = vcmp.ge.s32.totalorder %v243, 0
          %vm245 = vcmp.lt.s32.totalorder %v243, 256
          %vm246 = vmand %vm244, %vm245
          %247 = vst.msk [vmem:[#allocation2] sm:$0x3] %vm246, 0.0
          %248 = vst.msk [vmem:[#allocation3] sm:$0x3] %vm246, 0.0
        $region40: #{tpu_custom_call.1} parent=27 // pred_fallthru
          _
        %v249 = vld [vmem:[%s200] sm:$0xff]
        %v250 = vld [vmem:[%s209] sm:$0x3]
        %v252 = vcombine.high %v249, %v249
        %vm254 = vcmask 1043456
        %v255 = vsel %vm254, %v249, -inf
        %v256 = vrot.slane %v255, 4
        %v257 = vmax.f32 %v255, %v256
        %v258 = vrot.slane %v257, 2
        %v259 = vmax.f32 %v257, %v258
        %v260 = vrot.slane %v259, 1
        %v261 = vmax.f32 %v259, %v260
        %v262 = vsel %vm254, %v252, -inf
        %v263 = vrot.slane %v262, 4
        %v264 = vmax.f32 %v262, %v263
        %v265 = vrot.slane %v264, 2
        %v266 = vmax.f32 %v264, %v265
        %v267 = vrot.slane %v266, 1
        %v268 = vmax.f32 %v266, %v267
        %v271 = vcombine.low %v261, %v268
        %v273 = vsub.f32 %v249, %v271
        %v274 = vmul.f32 %v273, 1.442695
        %v275 = vpow.pop %v274
        %v277 = vcombine.high %v275, %v275
        %v279 = vsel %vm254, %v275, 0.0
        %v280 = vrot.slane %v279, 4
        %v281 = vadd.f32 %v279, %v280
        %v282 = vrot.slane %v281, 2
        %v283 = vadd.f32 %v281, %v282
        %v284 = vrot.slane %v283, 1
        %v285 = vadd.f32 %v283, %v284
        %v286 = vsel %vm254, %v277, 0.0
        %v287 = vrot.slane %v286, 4
        %v288 = vadd.f32 %v286, %v287
        %v289 = vrot.slane %v288, 2
        %v290 = vadd.f32 %v288, %v289
        %v291 = vrot.slane %v290, 1
        %v292 = vadd.f32 %v290, %v291
        %v293 = vlaneseq
        %v294 = vshrl.u32 %v293, 7
        %v295 = vlaneseq
        %v296 = vshrl.u32 %v295, 7
        %v297 = vsub.s32 0, %v296
        %v298 = vrot.slane %v250, %v297
        %v299 = vlaneseq
        %v300 = vshrl.u32 %v299, 7
        %v301 = vsub.s32 1, %v300
        %v302 = vrot.slane %v250, %v301
        %vm303 = vcmp.eq.s32.totalorder %v294, %v298
        %vm304 = vcmp.eq.s32.totalorder %v294, %v302
        %v305 = vsel %vm303, %v275, 0.0
        %v306 = vsel %vm304, %v277, 0.0
        %v307 = vsel %vm254, %v305, 0.0
        %v308 = vrot.slane %v307, 4
        %v309 = vadd.f32 %v307, %v308
        %v310 = vrot.slane %v309, 2
        %v311 = vadd.f32 %v309, %v310
        %v312 = vrot.slane %v311, 1
        %v313 = vadd.f32 %v311, %v312
        %v314 = vsel %vm254, %v306, 0.0
        %v315 = vrot.slane %v314, 4
        %v316 = vadd.f32 %v314, %v315
        %v317 = vrot.slane %v316, 2
        %v318 = vadd.f32 %v316, %v317
        %v319 = vrot.slane %v318, 1
        %v320 = vadd.f32 %v318, %v319
        %v321 = vrcp.pop %v285
        %v322 = vmul.f32 %v313, %v321
        %v323 = vrcp.pop %v292
        %v324 = vmul.f32 %v320, %v323
        %v325 = vmax.f32 %v322, 1e-09
        %v326 = vmax.f32 %v324, 1e-09
        %v327 = vmin.f32 %v325, 1.0
        %v328 = vmin.f32 %v326, 1.0
        %vm329 = vcmp.ge.s32.totalorder %v250, 0
        %vm330 = vcmp.ne.s32.totalorder %v250, 255
        %vm331 = vmand %vm329, %vm330
        %v332 = vsel %vm331, 1, 0
        %v333 = vcvt.s32.f32 %v332
        %v334 = vsub.f32 1.0, %v327
        %v335 = vsub.f32 1.0, %v328
        %v336 = vmul.f32 %v334, %v334
        %v337 = vmul.f32 %v335, %v335
        %v338 = vlog2.pop %v327
        %v339 = vmul.f32 %v338, 0.6931472
        %v340 = vlog2.pop %v328
        %v341 = vmul.f32 %v340, 0.6931472
        %v342 = vmul.f32 %v336, %v339
        %v343 = vmul.f32 %v337, %v341
        %v344 = vsub.f32 0.0, %v342
        %v345 = vsub.f32 0.0, %v343
        %v347 = vlaneseq
        %v348 = vshrl.u32 %v347, 7
        %v349 = vsub.s32 0, %v348
        %v350 = vrot.slane %v333, %v349
        %v351 = vlaneseq
        %v352 = vshrl.u32 %v351, 7
        %v353 = vsub.s32 1, %v352
        %v354 = vrot.slane %v333, %v353
        %v357 = vmul.f32 %v344, %v350
        %v358 = vmul.f32 %v345, %v354
        %v359 = vld [vmem:[#allocation2] sm:$0x3]
        %v362 = vcombine.low %v357, %v358
        %v364 = vunpack.c.l.s4 1966171168
        %v365 = vunpack.c.0.s8 %v364
        %v366 = vlaneseq
        %v367 = vshrl.u32 %v366, 7
        %v368 = vsub.s32 %v365, %v367
        %v369 = vrot.slane %v362, %v368
        %v371 = vunpack.c.l.s4 1966171168
        %v372 = vunpack.c.0.s8 %v371
        %v373 = vlaneseq
        %v374 = vshrl.u32 %v373, 7
        %v375 = vsub.s32 %v372, %v374
        %v376 = vrot.slane %v369, %v375
        %v378 = vadd.f32 %v359, %v376
        %v379 = vlaneseq
        %vm380 = vcmp.ge.s32.totalorder %v379, 0
        %vm381 = vcmp.lt.s32.totalorder %v379, 256
        %vm382 = vmand %vm380, %vm381
        %383 = vst.msk [vmem:[#allocation2] sm:$0x3] %vm382, %v378
        %v384 = vld [vmem:[#allocation3] sm:$0x3]
        %v385 = vadd.f32 %v384, %v333
        %386 = vst.msk [vmem:[#allocation3] sm:$0x3] %vm382, %v385
        // Predicated region
        $region41: #{tpu_custom_call.1} parent=27 // pred_check
          _
        $region42: #{tpu_custom_call.1} parent=27 // pred_check_branch
          %388 = sbr.rel (%p239) target = $region44
        $region43: #{tpu_custom_call.1} parent=27 // pred_region
          %v389 = vld [vmem:[#allocation2] sm:$0x3]
          %v391 = vlaneseq
          %v392 = vshrl.u32 %v391, 7
          %v393 = vsub.s32 0, %v392
          %v394 = vrot.slane %v389, %v393
          %v395 = vlaneseq
          %v396 = vshrl.u32 %v395, 7
          %v397 = vsub.s32 1, %v396
          %v398 = vrot.slane %v389, %v397
          %vm401 = vcmask 1040384
          %v402 = vsel %vm401, %v394, 0.0
          %v403 = vsel %vm401, %v398, 0.0
          %v404 = vadd.f32 %v402, %v403
          %405 = vadd.xlane.f32.xlu0 %v404
          %v406 = vpop.xlane.xlu0 %405
          %v407 = vrot.slane %v406, 4
          %v408 = vadd.f32 %v406, %v407
          %v409 = vrot.slane %v408, 2
          %v410 = vadd.f32 %v408, %v409
          %v411 = vrot.slane %v410, 1
          %v412 = vadd.f32 %v410, %v411
          %s413 = vtos %v412
          %v414 = vstv %s413
          %vm415 = vcmask 0
          %416 = vst.msk [vmem:[#allocation9] sm:$0x1] %vm415, %v414
          %v417 = vld [vmem:[#allocation3] sm:$0x3]
          %v419 = vlaneseq
          %v420 = vshrl.u32 %v419, 7
          %v421 = vsub.s32 0, %v420
          %v422 = vrot.slane %v417, %v421
          %v423 = vlaneseq
          %v424 = vshrl.u32 %v423, 7
          %v425 = vsub.s32 1, %v424
          %v426 = vrot.slane %v417, %v425
          %v429 = vsel %vm401, %v422, 0.0
          %v430 = vsel %vm401, %v426, 0.0
          %v431 = vadd.f32 %v429, %v430
          %432 = vadd.xlane.f32.xlu0 %v431
          %v433 = vpop.xlane.xlu0 %432
          %v434 = vrot.slane %v433, 4
          %v435 = vadd.f32 %v433, %v434
          %v436 = vrot.slane %v435, 2
          %v437 = vadd.f32 %v435, %v436
          %v438 = vrot.slane %v437, 1
          %v439 = vadd.f32 %v437, %v438
          %s440 = vtos %v439
          %v441 = vstv %s440
          %442 = vst.msk [vmem:[#allocation10] sm:$0x1] %vm415, %v441
        $region44: #{tpu_custom_call.1} parent=27 // pred_fallthru
          _
        // Predicated region
        $region45: #{tpu_custom_call.1} parent=27 // pred_check
          %p443 = pneg %p104
        $region46: #{tpu_custom_call.1} parent=27 // pred_check_branch
          %445 = sbr.rel (%p443) target = $region48
        $region47: #{tpu_custom_call.1} parent=27 // pred_region
          %s447 = ssub.s32 16, 16
          %448 = vsyncadd [#allocation6], %s447
          %s450 = sshll.u32 [#allocation9], 4
          %s451 = int_to_ptr.vmem [resolvable:$true] %s450
          %453 = dma.vmem_to_hbm [thread:$0]  %s451, 16, %s2, [#allocation6]
        $region48: #{tpu_custom_call.1} parent=27 // pred_fallthru
          _
        // Predicated region
        $region49: #{tpu_custom_call.1} parent=27 // pred_check
          %p454 = pneg %p125
        $region50: #{tpu_custom_call.1} parent=27 // pred_check_branch
          %456 = sbr.rel (%p454) target = $region52
        $region51: #{tpu_custom_call.1} parent=27 // pred_region
          %s458 = ssub.s32 16, 16
          %459 = vsyncadd [#allocation11], %s458
          %s461 = sshll.u32 [#allocation10], 4
          %s462 = int_to_ptr.vmem [resolvable:$true] %s461
          %464 = dma.vmem_to_hbm [thread:$0]  %s462, 16, %s3, [#allocation11]
        $region52: #{tpu_custom_call.1} parent=27 // pred_fallthru
          _
        // Predicated region
        $region53: #{tpu_custom_call.1} parent=27 // pred_check
          %p465 = pneg %p104
        $region54: #{tpu_custom_call.1} parent=27 // pred_check_branch
          %467 = sbr.rel (%p465) target = $region56
        $region55: #{tpu_custom_call.1} parent=27 // pred_region
          %468 = dma.done [#allocation6], 16
        $region56: #{tpu_custom_call.1} parent=27 // pred_fallthru
          _
        // Predicated region
        $region57: #{tpu_custom_call.1} parent=27 // pred_check
          %p469 = pneg %p125
        $region58: #{tpu_custom_call.1} parent=27 // pred_check_branch
          %471 = sbr.rel (%p469) target = $region60
        $region59: #{tpu_custom_call.1} parent=27 // pred_region
          %472 = dma.done [#allocation11], 16
        $region60: #{tpu_custom_call.1} parent=27 // pred_fallthru
          _
      $region28: #{tpu_custom_call.1} parent=5 // pred_fallthru
        _
      %p473 = scmp.le.s32.totalorder 2, %s18
      // Predicated region
      $region61: #{tpu_custom_call.1} parent=5 // pred_check
        %p474 = pneg %p473
      $region62: #{tpu_custom_call.1} parent=5 // pred_check_branch
        %476 = sbr.rel (%p474) target = $region64
      $region63: #{tpu_custom_call.1} parent=5 // pred_region
        %s477 = ssub.s32 %s18, 2
      $region64: #{tpu_custom_call.1} parent=5 // pred_fallthru
        _
    $region6: #{tpu_custom_call.1} parent=1 // loop_footer
      %s22 = sadd.s32 1, %s18
    $region7: #{tpu_custom_call.1} parent=1 // loop_footer_branch
      %17 = sbr.rel target = $region3
    $region8: #{tpu_custom_call.1} parent=1 // loop_exit
      _
    %478 = vsyncpa [#allocation5], 1
    %s479 = scalar_lea.sflag [#allocation5], 1
    %480 = vsyncpa %s479, 1
    %481 = vsyncpa [#allocation8], 1
    %s482 = scalar_lea.sflag [#allocation8], 1
    %483 = vsyncpa %s482, 1
    %484 = vsyncpa [#allocation6], 1
    %s485 = scalar_lea.sflag [#allocation6], 1
    %486 = vsyncpa %s485, 1
    %487 = vsyncpa [#allocation11], 1

</llo_original>
